<compile_context>
chip_gen: v7x
topology: tpu7x:2x2x1
jax: 0.10.0
libtpu: 0.0.40
codegen_flags: <defaults>
</compile_context>

<pallas_src>
import functools

import jax
import jax.numpy as jnp
from jax.experimental import pallas as pl
from jax.experimental.pallas import tpu as pltpu

_LANES = 128  # lane width of the per-block partial-sum outputs (unmasked vst)


def _tv_kernel(x_ref, h_part_ref, w_part_ref, *, h, w):
    """One grid step: per-block partial TV sums over a block of flattened planes.

    x_ref:      (n_blk, H*W) block -- n_blk image planes, plane flattened into
                the lane (minor) dimension (lane-dense layout).
    h_part_ref: (1, 1, LANES) partial sum (splat) of squared vertical diffs.
    w_part_ref: (1, 1, LANES) partial sum (splat) of squared horizontal diffs.
    """
    hw = h * w
    x = x_ref[...].astype(jnp.float32)  # do the math in f32 on every generation

    # --- vertical (along H) diffs: neighbour is +W in the flattened index. ---
    # Flattened indices [0, (H-1)*W) are exactly the valid (h, h+1) pairs, so
    # no mask is needed.  jnp.sum lowers to cross-vreg VPU adds plus a single
    # XLU reduce per block (the deferred/cheap reduction the review asks for).
    if h > 1:
        dh = x[:, w:] - x[:, : hw - w]
        h_sum = jnp.sum(dh * dh)
    else:
        h_sum = jnp.float32(0.0)
    h_part_ref[...] = jnp.full((1, 1, _LANES), h_sum, dtype=jnp.float32)

    # --- horizontal (along W) diffs: neighbour is +1; mask the wrap column. ---
    # Sequenced after the vertical reduction so dh and dw are never live at the
    # same time (halves peak vreg pressure on large blocks).
    if w > 1:
        dw = x[:, 1:] - x[:, : hw - 1]
        lane = jax.lax.broadcasted_iota(jnp.int32, dw.shape, 1)
        dw = jnp.where(lane % w < (w - 1), dw, 0.0)
        w_sum = jnp.sum(dw * dw)
    else:
        w_sum = jnp.float32(0.0)
    w_part_ref[...] = jnp.full((1, 1, _LANES), w_sum, dtype=jnp.float32)


def _pick_block_rows(n_rows, row_bytes, target_bytes):
    """Largest divisor of n_rows whose (rows, H*W) block stays under target_bytes.

    Prefers sublane-aligned (multiple-of-8) row counts so blocks are fully
    (8, 128)-tile aligned; a whole-array block is always legal.
    """
    cap = max(1, min(n_rows, target_bytes // max(1, row_bytes)))
    if cap >= n_rows:
        return n_rows
    for d in range(cap, 0, -1):            # sublane-aligned divisors first
        if n_rows % d == 0 and d % 8 == 0:
            return d
    for d in range(cap, 0, -1):            # fall back to any divisor
        if n_rows % d == 0:
            return d
    return 1


def tv_loss(x, tv_loss_weight=1.0, block_bytes=2 * 1024 * 1024):
    """TV loss matching the PyTorch TVLoss.forward semantics.

    x: (B, C, H, W) array.  Returns a scalar float32.
    block_bytes: per-buffer VMEM budget for one input block (kept small enough
                 that double-buffering fits every TPU generation, incl. v7x).
    """
    b, c, h, w = x.shape
    n = b * c
    hw = h * w

    # Lane-dense view: (B, C, H, W) -> (B*C, H*W).  Row-major, so within a row
    # index = h*W + w; the kernel's shift-by-W / shift-by-1 math relies on it.
    x2 = x.reshape(n, hw)

    row_bytes = hw * jnp.dtype(x.dtype).itemsize
    n_blk = _pick_block_rows(n, row_bytes, block_bytes)
    g = n // n_blk
    # TODO(synk): for planes too large for even a single (1, H*W) block, tile
    # H*W with a 1-row (W-element) halo in the index_map so the tile-boundary
    # vertical diffs are not dropped.

    kernel = functools.partial(_tv_kernel, h=h, w=w)

    h_part, w_part = pl.pallas_call(
        kernel,
        out_shape=(
            jax.ShapeDtypeStruct((g, 1, _LANES), jnp.float32),
            jax.ShapeDtypeStruct((g, 1, _LANES), jnp.float32),
        ),
        grid_spec=pltpu.PrefetchScalarGridSpec(
            num_scalar_prefetch=0,
            grid=(g,),
            in_specs=[pl.BlockSpec((n_blk, hw), lambda i: (i, 0))],
            out_specs=(
                pl.BlockSpec((1, 1, _LANES), lambda i: (i, 0, 0)),
                pl.BlockSpec((1, 1, _LANES), lambda i: (i, 0, 0)),
            ),
        ),
        compiler_params=pltpu.CompilerParams(
            # Each step writes its own partials -> no carried state -> the
            # grid axis can shard across v7x's two TensorCores.
            dimension_semantics=("parallel",),
            # Explicit scoped-VMEM budget: safe on v5e/v6e/v7x and leaves
            # plenty of headroom over the double-buffered ~2 MiB input blocks.
            vmem_limit_bytes=32 * 1024 * 1024,
        ),
    )(x2)

    # Glue: tiny final reduction + scaling (scalar / trace-time work).
    # NOTE: count_h is 0 when H == 1 (count_w when W == 1) -> inf/nan, which
    # matches the PyTorch module's behaviour.
    count_h = c * (h - 1) * w
    count_w = c * h * (w - 1)
    h_tv = jnp.sum(h_part[:, 0, 0])
    w_tv = jnp.sum(w_part[:, 0, 0])
    return tv_loss_weight * 2.0 * (h_tv / count_h + w_tv / count_w) / b


def _tv_loss_ref(x, tv_loss_weight=1.0):
    # Pure-JAX reference for correctness check.
    b, c, h, w = x.shape
    count_h = c * (h - 1) * w
    count_w = c * h * (w - 1)
    h_tv = jnp.sum((x[:, :, 1:, :] - x[:, :, : h - 1, :]) ** 2)
    w_tv = jnp.sum((x[:, :, :, 1:] - x[:, :, :, : w - 1]) ** 2)
    return tv_loss_weight * 2.0 * (h_tv / count_h + w_tv / count_w) / b


if __name__ == "__main__":
    key = jax.random.PRNGKey(0)

    # Small NCHW input consistent with the module's forward:
    # batch=2, channels=4, 16x16 spatial.
    x = jax.random.normal(key, (2, 4, 16, 16), dtype=jnp.float32)
    out = jax.block_until_ready(tv_loss(x, tv_loss_weight=1.0))
    ref = _tv_loss_ref(x, 1.0)
    assert jnp.allclose(out, ref, rtol=1e-4, atol=1e-5), (out, ref)

    # Second check with a tiny block budget to force a multi-step grid
    # (exercises DMA pipelining, per-block partial outputs and the wrapper
    # reduction on a still-small input).
    x2 = jax.random.normal(jax.random.fold_in(key, 1), (2, 8, 16, 16),
                           dtype=jnp.float32)
    out2 = jax.block_until_ready(
        tv_loss(x2, tv_loss_weight=0.5, block_bytes=8 * 1024))
    ref2 = _tv_loss_ref(x2, 0.5)
    assert jnp.allclose(out2, ref2, rtol=1e-4, atol=1e-5), (out2, ref2)

    print("KERNEL_OK")
</pallas_src>

<mosaic_0001>
module attributes {stable_mosaic.version = 11 : i64} {
  func.func @_tv_kernel(%arg0: i32, %arg1: memref<8x256xf32, #tpu.memory_space<vmem>>, %arg2: memref<1x1x128xf32, #tpu.memory_space<vmem>>, %arg3: memref<1x1x128xf32, #tpu.memory_space<vmem>>) attributes {dimension_semantics = [#tpu.dimension_semantics<parallel>], iteration_bounds = array<i64: 1>, scalar_prefetch = 0 : i64, scratch_operands = 0 : i64, tpu.core_type = #tpu.core_type<tc>, window_params = [{transform_indices = @transform_0, window_bounds = array<i64: 8, 256>}, {transform_indices = @transform_1, window_bounds = array<i64: 1, 1, 128>}, {transform_indices = @transform_2, window_bounds = array<i64: 1, 1, 128>}]} {
    %c0 = arith.constant 0 : index
    %c0_0 = arith.constant 0 : index
    %0 = vector.load %arg1[%c0, %c0_0] : memref<8x256xf32, #tpu.memory_space<vmem>>, vector<8x256xf32>
    %1 = vector.extract_strided_slice %0 {offsets = [0, 16], sizes = [8, 240], strides = [1, 1]} : vector<8x256xf32> to vector<8x240xf32>
    %2 = vector.extract_strided_slice %0 {offsets = [0, 0], sizes = [8, 240], strides = [1, 1]} : vector<8x256xf32> to vector<8x240xf32>
    %3 = arith.subf %1, %2 : vector<8x240xf32>
    %4 = arith.mulf %3, %3 : vector<8x240xf32>
    %5 = vector.shape_cast %4 : vector<8x240xf32> to vector<1x8x240xf32>
    %cst = arith.constant dense<0.000000e+00> : vector<1xf32>
    %6 = vector.multi_reduction <add>, %5, %cst [1, 2] : vector<1x8x240xf32> to vector<1xf32>
    %7 = vector.shape_cast %6 : vector<1xf32> to vector<1x1x1xf32>
    %8 = vector.extract %7[0, 0, 0] : f32 from vector<1x1x1xf32>
    %9 = vector.broadcast %8 : f32 to vector<1x1x128xf32>
    %c0_1 = arith.constant 0 : index
    %c0_2 = arith.constant 0 : index
    %c0_3 = arith.constant 0 : index
    %10 = vector.load %arg2[%c0_1, %c0_2, %c0_3] : memref<1x1x128xf32, #tpu.memory_space<vmem>>, vector<1x1x128xf32>
    tpu.vector_store %arg2[%c0_1, %c0_2, %c0_3], %9 {strides = array<i32>} : memref<1x1x128xf32, #tpu.memory_space<vmem>>, vector<1x1x128xf32>,
    %11 = vector.extract_strided_slice %0 {offsets = [0, 1], sizes = [8, 255], strides = [1, 1]} : vector<8x256xf32> to vector<8x255xf32>
    %12 = vector.extract_strided_slice %0 {offsets = [0, 0], sizes = [8, 255], strides = [1, 1]} : vector<8x256xf32> to vector<8x255xf32>
    %13 = arith.subf %11, %12 : vector<8x255xf32>
    %14 = tpu.iota {dimensions = array<i32: 1>} : vector<8x255xi32>
    %c16_i32 = arith.constant 16 : i32
    %c0_i32 = arith.constant 0 : i32
    %15 = arith.cmpi eq, %c16_i32, %c0_i32 : i32
    %c1_i32 = arith.constant 1 : i32
    %16 = arith.select %15, %c1_i32, %c16_i32 : i32
    %17 = vector.broadcast %16 : i32 to vector<8x255xi32>
    %18 = arith.remsi %14, %17 : vector<8x255xi32>
    %c0_i32_4 = arith.constant 0 : i32
    %19 = vector.broadcast %c0_i32_4 : i32 to vector<8x255xi32>
    %20 = arith.cmpi ne, %18, %19 : vector<8x255xi32>
    %c0_i32_5 = arith.constant 0 : i32
    %21 = vector.broadcast %c0_i32_5 : i32 to vector<8x255xi32>
    %22 = arith.cmpi slt, %18, %21 : vector<8x255xi32>
    %c0_i32_6 = arith.constant 0 : i32
    %23 = arith.cmpi slt, %16, %c0_i32_6 : i32
    %24 = vector.broadcast %23 : i1 to vector<8x255xi1>
    %25 = vector.broadcast %24 : vector<8x255xi1> to vector<8x255xi1>
    %26 = arith.xori %22, %25 : vector<8x255xi1>
    %27 = arith.andi %26, %20 : vector<8x255xi1>
    %28 = vector.broadcast %16 : i32 to vector<8x255xi32>
    %29 = arith.addi %18, %28 : vector<8x255xi32>
    %30 = arith.select %27, %29, %18 : vector<8x255xi1>, vector<8x255xi32>
    %c15_i32 = arith.constant 15 : i32
    %31 = vector.broadcast %c15_i32 : i32 to vector<8x255xi32>
    %32 = arith.cmpi slt, %30, %31 : vector<8x255xi32>
    %cst_7 = arith.constant 0.000000e+00 : f32
    %33 = vector.broadcast %cst_7 : f32 to vector<8x255xf32>
    %34 = arith.select %32, %13, %33 : vector<8x255xi1>, vector<8x255xf32>
    %35 = arith.mulf %34, %34 : vector<8x255xf32>
    %36 = vector.shape_cast %35 : vector<8x255xf32> to vector<1x8x255xf32>
    %cst_8 = arith.constant dense<0.000000e+00> : vector<1xf32>
    %37 = vector.multi_reduction <add>, %36, %cst_8 [1, 2] : vector<1x8x255xf32> to vector<1xf32>
    %38 = vector.shape_cast %37 : vector<1xf32> to vector<1x1x1xf32>
    %39 = vector.extract %38[0, 0, 0] : f32 from vector<1x1x1xf32>
    %40 = vector.broadcast %39 : f32 to vector<1x1x128xf32>
    %c0_9 = arith.constant 0 : index
    %c0_10 = arith.constant 0 : index
    %c0_11 = arith.constant 0 : index
    %41 = vector.load %arg3[%c0_9, %c0_10, %c0_11] : memref<1x1x128xf32, #tpu.memory_space<vmem>>, vector<1x1x128xf32>
    tpu.vector_store %arg3[%c0_9, %c0_10, %c0_11], %40 {strides = array<i32>} : memref<1x1x128xf32, #tpu.memory_space<vmem>>, vector<1x1x128xf32>,
    return
  }
  func.func @transform_0(%arg0: i32) -> (i32, i32) {
    %c0_i32 = arith.constant 0 : i32
    %c0_i32_0 = arith.constant 0 : i32
    return %arg0, %c0_i32 : i32, i32
  }
  func.func @transform_1(%arg0: i32) -> (i32, i32, i32) {
    %c0_i32 = arith.constant 0 : i32
    %c0_i32_0 = arith.constant 0 : i32
    %c0_i32_1 = arith.constant 0 : i32
    return %arg0, %c0_i32, %c0_i32_0 : i32, i32, i32
  }
  func.func @transform_2(%arg0: i32) -> (i32, i32, i32) {
    %c0_i32 = arith.constant 0 : i32
    %c0_i32_0 = arith.constant 0 : i32
    %c0_i32_1 = arith.constant 0 : i32
    return %arg0, %c0_i32, %c0_i32_0 : i32, i32, i32
  }
}

</mosaic_0001>

<llo_original>
// kernel: tpu_custom_call.1
$region0: #{tpu_custom_call.1}
  #allocation0 [shape = 'u32[]', space=smem, size = 0x4, offset = 0x4, fixed_abs, tag = 'smem constant byte address 0x4 - core index']
  #allocation1 [shape = 'u32[144,128]{1,0:T(1,128)}', space=vmem, size = 0x12000, scoped, tag = 'internal scratch']
  %s0 = inlined_call_operand.hbm [shape: f32[8,256], index: 0, kind: input, shape index: {}]
  %s1 = inlined_call_operand.hbm [shape: f32[1,1,128], index: 1, kind: output, shape index: {0}]
  %s2 = inlined_call_operand.hbm [shape: f32[1,1,128], index: 2, kind: output, shape index: {1}]
  %3 = xla_tuple %s1, %s2
  %s4 = sld [smem:[#allocation0]]
  $region26: #{tpu_custom_call.1} parent=0
    _
  %s6 = ssub.s32 1, %s4
  %s7 = scalar_select 0, %s6, %s4
  $region1: #{tpu_custom_call.1} parent=0
    #allocation2 [shape = 'u8[8192]{0}', space=vmem, size = 0x2000, scoped, tag = 'input window, operand 0, single buffered']
    #allocation3 [shape = 's32[1]{0}', space=sflag, size = 0x4, scoped, tag = 'scoped memory for tpu_custom_call.1']
    #allocation4 [shape = 's32[1]{0}', space=sflag, size = 0x4, scoped, tag = 'scoped memory for tpu_custom_call.1']
    #allocation5 [shape = 'u8[512]{0}', space=vmem, size = 0x400, scoped, tag = 'output window, operand 0, single buffered']
    #allocation6 [shape = 'u8[512]{0}', space=vmem, size = 0x400, scoped, tag = 'output window, operand 1, single buffered']
    #allocation7 [shape = 's32[1]{0}', space=sflag, size = 0x4, scoped, tag = 'scoped memory for tpu_custom_call.1']
    %8 = vsyncpa [#allocation3], 0
    %9 = vsyncpa [#allocation4], 0
    %10 = vsyncpa [#allocation7], 0
    // Predicated region
    $region2: #{tpu_custom_call.1} parent=1 // pred_check
      _
    $region3: #{tpu_custom_call.1} parent=1 // pred_check_branch
      %12 = sbr.rel (0) target = $region5
    $region4: #{tpu_custom_call.1} parent=1 // pred_region
      %s14 = ssub.s32 256, 256
      %15 = vsyncadd [#allocation3], %s14
      %s17 = sshll.u32 [#allocation2], 4
      %s18 = int_to_ptr.vmem [resolvable:$true] %s17
      %20 = dma.hbm_to_vmem [thread:$0]  %s0, 256, %s18, [#allocation3]
    $region5: #{tpu_custom_call.1} parent=1 // pred_fallthru
      _
    // Predicated region
    $region6: #{tpu_custom_call.1} parent=1 // pred_check
      _
    $region7: #{tpu_custom_call.1} parent=1 // pred_check_branch
      %22 = sbr.rel (0) target = $region9
    $region8: #{tpu_custom_call.1} parent=1 // pred_region
      %23 = dma.done [#allocation3], 256
    $region9: #{tpu_custom_call.1} parent=1 // pred_fallthru
      _
    %v24 = vld [vmem:[#allocation2] sm:$0xff]
    %v25 = vld [vmem:[#allocation2 + $0x8] sm:$0xff]
    %28 = vrot.lane.b32.xlu0 %v24, 16
    %v29 = vpop.permute.xlu0 %28
    %30 = vrot.lane.b32.xlu0 %v25, 16
    %v31 = vpop.permute.xlu0 %30
    %vm32 = vcmask 130048
    %v33 = vsel %vm32, %v29, %v31
    %v36 = vsub.f32 %v24, %v29
    %v37 = vsub.f32 %v25, %v33
    %v38 = vmul.f32 %v36, %v36
    %v39 = vmul.f32 %v37, %v37
    %42 = vrot.lane.b32.xlu0 %v38, 112
    %v43 = vpop.permute.xlu0 %42
    %44 = vrot.lane.b32.xlu0 %v39, 112
    %v45 = vpop.permute.xlu0 %44
    %vm46 = vcmask 916480
    %v47 = vsel %vm46, %v43, %v45
    %v50 = vsel %vm46, %v45, 0.0
    %v51 = vadd.f32 %v47, %v50
    %52 = vadd.xlane.f32.xlu0 %v51
    %v53 = vpop.xlane.xlu0 %52
    %v54 = vrot.slane %v53, 4
    %v55 = vadd.f32 %v53, %v54
    %v56 = vrot.slane %v55, 2
    %v57 = vadd.f32 %v55, %v56
    %v58 = vrot.slane %v57, 1
    %v59 = vadd.f32 %v57, %v58
    %s60 = vtos %v59
    %v61 = vstv %s60
    %62 = vst [vmem:[#allocation5] sm:$0x1] %v61
    %63 = vrot.lane.b32.xlu0 %v24, 1
    %v64 = vpop.permute.xlu0 %63
    %65 = vrot.lane.b32.xlu0 %v25, 1
    %v66 = vpop.permute.xlu0 %65
    %vm67 = vcmask 7168
    %v68 = vsel %vm67, %v64, %v66
    %v71 = vsub.f32 %v24, %v64
    %v72 = vsub.f32 %v25, %v68
    %v73 = vlaneseq
    %v74 = vand.u32 %v73, 127
    %v75 = vadd.s32 %v74, 128
    %vm76 = vcmp.lt.s32.totalorder %v74, 0
    %v77 = vsub.s32 0, %v74
    %v78 = vsel %vm76, %v77, %v74
    %v79 = vshrl.u32 %v78, 4
    %v80 = vand.u32 %v78, 15
    %v81 = vsub.s32 0, %v80
    %v82 = vsel %vm76, %v81, %v80
    %vm83 = vcmp.lt.s32.totalorder %v75, 0
    %v84 = vsub.s32 0, %v75
    %v85 = vsel %vm83, %v84, %v75
    %v86 = vshrl.u32 %v85, 4
    %v87 = vand.u32 %v85, 15
    %v88 = vsub.s32 0, %v87
    %v89 = vsel %vm83, %v88, %v87
    %vm90 = vcmp.ne.s32.totalorder %v82, 0
    %vm91 = vcmp.ne.s32.totalorder %v89, 0
    %vm92 = vcmp.lt.s32.totalorder %v82, 0
    %vm93 = vcmp.lt.s32.totalorder %v89, 0
    %vm94 = vmand %vm92, %vm90
    %vm95 = vmand %vm93, %vm91
    %v96 = vadd.s32 %v82, 16
    %v97 = vadd.s32 %v89, 16
    %v98 = vsel %vm94, %v96, %v82
    %v99 = vsel %vm95, %v97, %v89
    %vm100 = vcmp.lt.s32.totalorder %v98, 15
    %vm101 = vcmp.lt.s32.totalorder %v99, 15
    %104 = vrot.lane.b32.xlu0 %v71, 127
    %v105 = vpop.permute.xlu0 %104
    %106 = vrot.lane.b32.xlu0 %v72, 127
    %v107 = vpop.permute.xlu0 %106
    %vm108 = vcmask 1039360
    %v109 = vsel %vm108, %v105, %v107
    %v112 = vsel %vm100, %v109, 0.0
    %v113 = vsel %vm101, %v107, 0.0
    %v114 = vmul.f32 %v112, %v112
    %v115 = vmul.f32 %v113, %v113
    %v116 = vsel %vm108, %v115, 0.0
    %v117 = vadd.f32 %v114, %v116
    %118 = vadd.xlane.f32.xlu0 %v117
    %v119 = vpop.xlane.xlu0 %118
    %v120 = vrot.slane %v119, 4
    %v121 = vadd.f32 %v119, %v120
    %v122 = vrot.slane %v121, 2
    %v123 = vadd.f32 %v121, %v122
    %v124 = vrot.slane %v123, 1
    %v125 = vadd.f32 %v123, %v124
    %s126 = vtos %v125
    %v127 = vstv %s126
    %128 = vst [vmem:[#allocation6] sm:$0x1] %v127
    // Predicated region
    $region10: #{tpu_custom_call.1} parent=1 // pred_check
      _
    $region11: #{tpu_custom_call.1} parent=1 // pred_check_branch
      %130 = sbr.rel (0) target = $region13
    $region12: #{tpu_custom_call.1} parent=1 // pred_region
      %s132 = ssub.s32 16, 16
      %133 = vsyncadd [#allocation4], %s132
      %s135 = sshll.u32 [#allocation5], 4
      %s136 = int_to_ptr.vmem [resolvable:$true] %s135
      %138 = dma.vmem_to_hbm [thread:$0]  %s136, 16, %s1, [#allocation4]
    $region13: #{tpu_custom_call.1} parent=1 // pred_fallthru
      _
    // Predicated region
    $region14: #{tpu_custom_call.1} parent=1 // pred_check
      _
    $region15: #{tpu_custom_call.1} parent=1 // pred_check_branch
      %140 = sbr.rel (0) target = $region17
    $region16: #{tpu_custom_call.1} parent=1 // pred_region
      %s142 = ssub.s32 16, 16
      %143 = vsyncadd [#allocation7], %s142
      %s145 = sshll.u32 [#allocation6], 4
      %s146 = int_to_ptr.vmem [resolvable:$true] %s145
      %148 = dma.vmem_to_hbm [thread:$0]  %s146, 16, %s2, [#allocation7]
    $region17: #{tpu_custom_call.1} parent=1 // pred_fallthru
      _
    // Predicated region
    $region18: #{tpu_custom_call.1} parent=1 // pred_check
      _
    $region19: #{tpu_custom_call.1} parent=1 // pred_check_branch
      %150 = sbr.rel (0) target = $region21
    $region20: #{tpu_custom_call.1} parent=1 // pred_region
      %151 = dma.done [#allocation4], 16
    $region21: #{tpu_custom_call.1} parent=1 // pred_fallthru
      _
    // Predicated region
    $region22: #{tpu_custom_call.1} parent=1 // pred_check
      _
    $region23: #{tpu_custom_call.1} parent=1 // pred_check_branch
      %153 = sbr.rel (0) target = $region25
    $region24: #{tpu_custom_call.1} parent=1 // pred_region
      %154 = dma.done [#allocation7], 16
    $region25: #{tpu_custom_call.1} parent=1 // pred_fallthru
      _
    %155 = vsyncpa [#allocation3], 1
    %156 = vsyncpa [#allocation4], 1
    %157 = vsyncpa [#allocation7], 1

</llo_original>
